<compile_context>
chip_gen: v6e
topology: v6e:2x2x1
jax: 0.10.0
libtpu: 0.0.40
codegen_flags: <defaults>
</compile_context>

<pallas_src>
import functools

import jax
import jax.numpy as jnp
from jax.experimental import pallas as pl
from jax.experimental.pallas import tpu as pltpu


def _rmse_partial_kernel(yhat_ref, y_ref, out_ref, acc_ref, *,
                         rows_valid, row_tile, blocks_per_split, lane_width):
    s = pl.program_id(0)          # parallel split (megacore on v7x)
    k = pl.program_id(1)          # sequential reduction axis within a split

    @pl.when(k == 0)
    def _():
        acc_ref[...] = jnp.zeros_like(acc_ref)

    # Unclamped global block index: used for the tail / overshoot mask.
    block_idx = s * blocks_per_split + k
    row_start = block_idx * row_tile
    remaining = rows_valid - row_start
    row_ids = jax.lax.broadcasted_iota(jnp.int32, (row_tile, lane_width), 0)
    mask = row_ids < remaining    # rows past the valid extent contribute 0

    d = yhat_ref[...].astype(jnp.float32) - y_ref[...].astype(jnp.float32)
    dd = jnp.where(mask, d * d, jnp.float32(0.0))

    # Fold (row_tile, 128) -> (row_tile//8, 8, 128) and sum the leading axis:
    # last two dims match the native vreg tile, so this is pure VPU adds.
    acc_ref[...] += dd.reshape(row_tile // 8, 8, lane_width).sum(axis=0)

    @pl.when(k == pl.num_programs(1) - 1)
    def _():
        out_ref[...] = acc_ref[...]   # (8, 128) partial sums for this split


def rmse_loss(yhat, y, eps=1e-6, *, row_tile=2048, lane_width=128,
              num_splits=2):
    assert yhat.shape == y.shape, "yhat and y must have identical shapes"
    assert row_tile % 8 == 0
    n_elems = yhat.size
    assert n_elems > 0

    flat_yhat = yhat.reshape(-1)
    flat_y = y.reshape(-1)

    # Align total length to 8*128 so the slab is (multiple-of-8 rows, 128).
    # Pad is at most 1023 elements (and zero in the common aligned case);
    # zero-pads cancel in (yhat - y) so they contribute 0 to the sum.
    align = 8 * lane_width
    pad = (-n_elems) % align
    if pad:
        flat_yhat = jnp.pad(flat_yhat, (0, pad))
        flat_y = jnp.pad(flat_y, (0, pad))

    rows = flat_yhat.size // lane_width          # multiple of 8
    yhat2d = flat_yhat.reshape(rows, lane_width)
    y2d = flat_y.reshape(rows, lane_width)

    rt = min(row_tile, rows)                     # block rows (multiple of 8)
    nblocks = pl.cdiv(rows, rt)
    n_splits = num_splits if nblocks >= num_splits else 1
    bps = pl.cdiv(nblocks, n_splits)             # blocks per split

    # Clamp so overshoot steps (when nblocks % n_splits != 0) re-read the last
    # valid block; their contribution is zeroed by the in-kernel row mask.
    def in_index_map(s, k):
        return (jnp.minimum(s * bps + k, nblocks - 1), 0)

    kernel = functools.partial(
        _rmse_partial_kernel,
        rows_valid=rows, row_tile=rt,
        blocks_per_split=bps, lane_width=lane_width)

    partials = pl.pallas_call(
        kernel,
        out_shape=jax.ShapeDtypeStruct((n_splits * 8, lane_width), jnp.float32),
        grid_spec=pltpu.PrefetchScalarGridSpec(
            num_scalar_prefetch=0,
            grid=(n_splits, bps),
            in_specs=[
                pl.BlockSpec((rt, lane_width), in_index_map),
                pl.BlockSpec((rt, lane_width), in_index_map),
            ],
            out_specs=pl.BlockSpec((8, lane_width), lambda s, k: (s, 0)),
            scratch_shapes=[pltpu.VMEM((8, lane_width), jnp.float32)],
        ),
        compiler_params=pltpu.CompilerParams(
            dimension_semantics=("parallel", "arbitrary")),
    )(yhat2d, y2d)

    # Tiny finalize in the wrapper: cross-split / cross-lane sum, mean, sqrt.
    sse = jnp.sum(partials)
    mse = sse / jnp.float32(n_elems)
    return jnp.sqrt(mse + jnp.float32(eps))


if __name__ == "__main__":
    key = jax.random.PRNGKey(0)
    k1, k2 = jax.random.split(key)

    # Shapes consistent with a latency-predictor regression head; RMSELoss
    # reduces over all elements of any shape.
    shape = (2, 4, 16, 16)
    yhat = jax.random.normal(k1, shape, dtype=jnp.float32)
    y = jax.random.normal(k2, shape, dtype=jnp.float32)

    loss = rmse_loss(yhat, y, eps=1e-6)
    loss = jax.block_until_ready(loss)

    # Sanity check against a pure-JAX reference (same semantics as torch).
    ref = jnp.sqrt(jnp.mean((yhat - y) ** 2) + 1e-6)
    assert jnp.allclose(loss, ref, rtol=1e-5, atol=1e-6), (loss, ref)

    print("KERNEL_OK")
</pallas_src>

<mosaic_0001>
module attributes {stable_mosaic.version = 11 : i64} {
  func.func @_rmse_partial_kernel(%arg0: i32, %arg1: i32, %arg2: memref<16x128xf32, #tpu.memory_space<vmem>>, %arg3: memref<16x128xf32, #tpu.memory_space<vmem>>, %arg4: memref<8x128xf32, #tpu.memory_space<vmem>>, %arg5: memref<8x128xf32, #tpu.memory_space<vmem>>) attributes {dimension_semantics = [#tpu.dimension_semantics<parallel>, #tpu.dimension_semantics<arbitrary>], iteration_bounds = array<i64: 1, 1>, scalar_prefetch = 0 : i64, scratch_operands = 1 : i64, tpu.core_type = #tpu.core_type<tc>, window_params = [{transform_indices = @transform_0, window_bounds = array<i64: 16, 128>}, {transform_indices = @transform_1, window_bounds = array<i64: 16, 128>}, {transform_indices = @transform_2, window_bounds = array<i64: 8, 128>}]} {
    %c0_i32 = arith.constant 0 : i32
    %0 = arith.cmpi eq, %arg1, %c0_i32 : i32
    %1 = arith.extui %0 : i1 to i32
    %c0_i32_0 = arith.constant 0 : i32
    %2 = arith.cmpi ne, %1, %c0_i32_0 : i32
    scf.if %2 {
      %cst_12 = arith.constant 0.000000e+00 : f32
      %24 = vector.broadcast %cst_12 : f32 to vector<8x128xf32>
      %c0_13 = arith.constant 0 : index
      %c0_14 = arith.constant 0 : index
      %25 = vector.load %arg5[%c0_13, %c0_14] : memref<8x128xf32, #tpu.memory_space<vmem>>, vector<8x128xf32>
      tpu.vector_store %arg5[%c0_13, %c0_14], %24 {strides = array<i32>} : memref<8x128xf32, #tpu.memory_space<vmem>>, vector<8x128xf32>,
    } else {
    }
    %c1_i32 = arith.constant 1 : i32
    %3 = arith.muli %arg0, %c1_i32 : i32
    %4 = arith.addi %3, %arg1 : i32
    %c16_i32 = arith.constant 16 : i32
    %5 = arith.muli %4, %c16_i32 : i32
    %c16_i32_1 = arith.constant 16 : i32
    %6 = arith.subi %c16_i32_1, %5 : i32
    %7 = tpu.iota {dimensions = array<i32: 0>} : vector<16x128xi32>
    %8 = vector.broadcast %6 : i32 to vector<16x128xi32>
    %9 = arith.cmpi slt, %7, %8 : vector<16x128xi32>
    %c0 = arith.constant 0 : index
    %c0_2 = arith.constant 0 : index
    %10 = vector.load %arg2[%c0, %c0_2] : memref<16x128xf32, #tpu.memory_space<vmem>>, vector<16x128xf32>
    %c0_3 = arith.constant 0 : index
    %c0_4 = arith.constant 0 : index
    %11 = vector.load %arg3[%c0_3, %c0_4] : memref<16x128xf32, #tpu.memory_space<vmem>>, vector<16x128xf32>
    %12 = arith.subf %10, %11 : vector<16x128xf32>
    %13 = arith.mulf %12, %12 : vector<16x128xf32>
    %cst = arith.constant 0.000000e+00 : f32
    %14 = vector.broadcast %cst : f32 to vector<16x128xf32>
    %15 = arith.select %9, %13, %14 : vector<16x128xi1>, vector<16x128xf32>
    %c0_5 = arith.constant 0 : index
    %c0_6 = arith.constant 0 : index
    %16 = vector.load %arg5[%c0_5, %c0_6] : memref<8x128xf32, #tpu.memory_space<vmem>>, vector<8x128xf32>
    %17 = vector.shape_cast %15 : vector<16x128xf32> to vector<2x8x128xf32>
    %cst_7 = arith.constant dense<0.000000e+00> : vector<8x128xf32>
    %18 = vector.multi_reduction <add>, %17, %cst_7 [0] : vector<2x8x128xf32> to vector<8x128xf32>
    %19 = arith.addf %16, %18 : vector<8x128xf32>
    %c0_8 = arith.constant 0 : index
    %c0_9 = arith.constant 0 : index
    %20 = vector.load %arg5[%c0_8, %c0_9] : memref<8x128xf32, #tpu.memory_space<vmem>>, vector<8x128xf32>
    tpu.vector_store %arg5[%c0_8, %c0_9], %19 {strides = array<i32>} : memref<8x128xf32, #tpu.memory_space<vmem>>, vector<8x128xf32>,
    %c0_i32_10 = arith.constant 0 : i32
    %21 = arith.cmpi eq, %arg1, %c0_i32_10 : i32
    %22 = arith.extui %21 : i1 to i32
    %c0_i32_11 = arith.constant 0 : i32
    %23 = arith.cmpi ne, %22, %c0_i32_11 : i32
    scf.if %23 {
      %c0_12 = arith.constant 0 : index
      %c0_13 = arith.constant 0 : index
      %24 = vector.load %arg5[%c0_12, %c0_13] : memref<8x128xf32, #tpu.memory_space<vmem>>, vector<8x128xf32>
      %c0_14 = arith.constant 0 : index
      %c0_15 = arith.constant 0 : index
      %25 = vector.load %arg4[%c0_14, %c0_15] : memref<8x128xf32, #tpu.memory_space<vmem>>, vector<8x128xf32>
      tpu.vector_store %arg4[%c0_14, %c0_15], %24 {strides = array<i32>} : memref<8x128xf32, #tpu.memory_space<vmem>>, vector<8x128xf32>,
    } else {
    }
    return
  }
  func.func @transform_0(%arg0: i32, %arg1: i32) -> (i32, i32) {
    %c1_i32 = arith.constant 1 : i32
    %0 = arith.muli %arg0, %c1_i32 : i32
    %1 = arith.addi %0, %arg1 : i32
    %c0_i32 = arith.constant 0 : i32
    %2 = arith.minsi %1, %c0_i32 : i32
    %c0_i32_0 = arith.constant 0 : i32
    %c0_i32_1 = arith.constant 0 : i32
    return %2, %c0_i32_0 : i32, i32
  }
  func.func @transform_1(%arg0: i32, %arg1: i32) -> (i32, i32) {
    %c1_i32 = arith.constant 1 : i32
    %0 = arith.muli %arg0, %c1_i32 : i32
    %1 = arith.addi %0, %arg1 : i32
    %c0_i32 = arith.constant 0 : i32
    %2 = arith.minsi %1, %c0_i32 : i32
    %c0_i32_0 = arith.constant 0 : i32
    %c0_i32_1 = arith.constant 0 : i32
    return %2, %c0_i32_0 : i32, i32
  }
  func.func @transform_2(%arg0: i32, %arg1: i32) -> (i32, i32) {
    %c0_i32 = arith.constant 0 : i32
    %c0_i32_0 = arith.constant 0 : i32
    return %arg0, %c0_i32 : i32, i32
  }
}

</mosaic_0001>

<llo_original>
// kernel: tpu_custom_call.1
$region0: #{tpu_custom_call.1}
  #allocation0 [shape = 'u32[]', space=smem, size = 0x4, offset = 0x4, fixed_abs, tag = 'smem constant byte address 0x4 - core index']
  #allocation1 [shape = 'u32[144,128]{1,0:T(1,128)}', space=vmem, size = 0x12000, scoped, tag = 'internal scratch']
  #allocation2 [shape = 'f32[8,128]{1,0:T(8,128)}', space=vmem, size = 0x1000, scoped, tag = 'scratch operand']
  %s0 = inlined_call_operand.hbm [shape: f32[16,128], index: 0, kind: input, shape index: {}]
  %s1 = inlined_call_operand.hbm [shape: f32[16,128], index: 1, kind: input, shape index: {}]
  %s2 = inlined_call_operand.hbm [shape: f32[8,128], index: 2, kind: output, shape index: {}]
  %s3 = sld [smem:[#allocation0]]
  $region34: #{tpu_custom_call.1} parent=0
    _
  %s5 = ssub.s32 1, %s3
  %s6 = scalar_select 0, %s5, %s3
  $region1: #{tpu_custom_call.1} parent=0
    #allocation3 [shape = 'u8[8192]{0}', space=vmem, size = 0x2000, scoped, tag = 'input window, operand 0, single buffered']
    #allocation4 [shape = 's32[1]{0}', space=sflag, size = 0x4, scoped, tag = 'scoped memory for tpu_custom_call.1']
    #allocation5 [shape = 's32[1]{0}', space=sflag, size = 0x4, scoped, tag = 'scoped memory for tpu_custom_call.1']
    #allocation6 [shape = 'u8[8192]{0}', space=vmem, size = 0x2000, scoped, tag = 'input window, operand 1, single buffered']
    #allocation7 [shape = 's32[1]{0}', space=sflag, size = 0x4, scoped, tag = 'scoped memory for tpu_custom_call.1']
    #allocation8 [shape = 'u8[4096]{0}', space=vmem, size = 0x1000, scoped, tag = 'output window, operand 0, single buffered']
    %7 = vsyncpa [#allocation4], 0
    %8 = vsyncpa [#allocation7], 0
    %9 = vsyncpa [#allocation5], 0
    // Predicated region
    $region2: #{tpu_custom_call.1} parent=1 // pred_check
      _
    $region3: #{tpu_custom_call.1} parent=1 // pred_check_branch
      %11 = sbr.rel (0) target = $region5
    $region4: #{tpu_custom_call.1} parent=1 // pred_region
      %s12 = sadd.s32 0, 0
      %p13 = scmp.lt.s32.totalorder %s12, 0
      %s14 = scalar_select %p13, %s12, 0
      %s15 = smul.u32 2, %s14
      %s17 = ssub.s32 256, 256
      %18 = vsyncadd [#allocation4], %s17
      %s19 = smul.addr %s15, 128
      %s20 = scalar_lea.hbm %s0, %s19
      %s21 = sshll.u32 [#allocation3], 4
      %s22 = int_to_ptr.vmem [resolvable:$true] %s21
      %27 = dma.hbm_to_vmem [thread:$0]  %s20, 256, %s22, [#allocation4], 128, 128, 8
    $region5: #{tpu_custom_call.1} parent=1 // pred_fallthru
      _
    // Predicated region
    $region6: #{tpu_custom_call.1} parent=1 // pred_check
      _
    $region7: #{tpu_custom_call.1} parent=1 // pred_check_branch
      %29 = sbr.rel (0) target = $region9
    $region8: #{tpu_custom_call.1} parent=1 // pred_region
      %s30 = sadd.s32 0, 0
      %p31 = scmp.lt.s32.totalorder %s30, 0
      %s32 = scalar_select %p31, %s30, 0
      %s33 = smul.u32 2, %s32
      %s35 = ssub.s32 256, 256
      %36 = vsyncadd [#allocation7], %s35
      %s37 = smul.addr %s33, 128
      %s38 = scalar_lea.hbm %s1, %s37
      %s39 = sshll.u32 [#allocation6], 4
      %s40 = int_to_ptr.vmem [resolvable:$true] %s39
      %45 = dma.hbm_to_vmem [thread:$0]  %s38, 256, %s40, [#allocation7], 128, 128, 8
    $region9: #{tpu_custom_call.1} parent=1 // pred_fallthru
      _
    // Predicated region
    $region10: #{tpu_custom_call.1} parent=1 // pred_check
      _
    $region11: #{tpu_custom_call.1} parent=1 // pred_check_branch
      %47 = sbr.rel (0) target = $region13
    $region12: #{tpu_custom_call.1} parent=1 // pred_region
      %48 = dma.done [#allocation4], 256
    $region13: #{tpu_custom_call.1} parent=1 // pred_fallthru
      _
    // Predicated region
    $region14: #{tpu_custom_call.1} parent=1 // pred_check
      _
    $region15: #{tpu_custom_call.1} parent=1 // pred_check_branch
      %50 = sbr.rel (0) target = $region17
    $region16: #{tpu_custom_call.1} parent=1 // pred_region
      %51 = dma.done [#allocation7], 256
    $region17: #{tpu_custom_call.1} parent=1 // pred_fallthru
      _
    %s52 = sadd.s32 0, 0
    %p53 = scmp.lt.s32.totalorder %s52, 0
    %s54 = scalar_select %p53, %s52, 0
    %s55 = smul.u32 2, %s54
    %s56 = sadd.s32 0, 0
    %p57 = scmp.lt.s32.totalorder %s56, 0
    %s58 = scalar_select %p57, %s56, 0
    %s59 = smul.u32 2, %s58
    %p60 = scmp.eq.s32.totalorder 0, 0
    // Predicated region
    $region18: #{tpu_custom_call.1} parent=1 // pred_check
      %p61 = pneg %p60
    $region19: #{tpu_custom_call.1} parent=1 // pred_check_branch
      %63 = sbr.rel (%p61) target = $region21
    $region20: #{tpu_custom_call.1} parent=1 // pred_region
      %64 = vst [vmem:[#allocation2] sm:$0xff] 0.0
    $region21: #{tpu_custom_call.1} parent=1 // pred_fallthru
      _
    %s65 = sadd.s32 0, 0
    %s66 = smul.u32 %s65, 16
    %s67 = ssub.s32 16, %s66
    %v68 = vlaneseq
    %v69 = vshrl.u32 %v68, 7
    %v70 = vadd.s32 %v69, 8
    %v71 = vstv %s67
    %vm72 = vcmp.lt.s32.totalorder %v69, %v71
    %vm73 = vcmp.lt.s32.totalorder %v70, %v71
    %v74 = vld [vmem:[#allocation3] sm:$0xff]
    %v75 = vld [vmem:[#allocation3 + $0x8] sm:$0xff]
    %v76 = vld [vmem:[#allocation6] sm:$0xff]
    %v77 = vld [vmem:[#allocation6 + $0x8] sm:$0xff]
    %v78 = vsub.f32 %v74, %v76
    %v79 = vsub.f32 %v75, %v77
    %v80 = vmul.f32 %v78, %v78
    %v81 = vmul.f32 %v79, %v79
    %v82 = vsel %vm72, %v80, 0.0
    %v83 = vsel %vm73, %v81, 0.0
    %v84 = vld [vmem:[#allocation2] sm:$0xff]
    %v85 = vadd.f32 %v82, %v83
    %v86 = vadd.f32 %v84, %v85
    %87 = vst [vmem:[#allocation2] sm:$0xff] %v86
    // Predicated region
    $region22: #{tpu_custom_call.1} parent=1 // pred_check
      %p88 = pneg %p60
    $region23: #{tpu_custom_call.1} parent=1 // pred_check_branch
      %90 = sbr.rel (%p88) target = $region25
    $region24: #{tpu_custom_call.1} parent=1 // pred_region
      %v91 = vld [vmem:[#allocation2] sm:$0xff]
      %92 = vst [vmem:[#allocation8] sm:$0xff] %v91
    $region25: #{tpu_custom_call.1} parent=1 // pred_fallthru
      _
    // Predicated region
    $region26: #{tpu_custom_call.1} parent=1 // pred_check
      _
    $region27: #{tpu_custom_call.1} parent=1 // pred_check_branch
      %94 = sbr.rel (0) target = $region29
    $region28: #{tpu_custom_call.1} parent=1 // pred_region
      %s96 = ssub.s32 128, 128
      %97 = vsyncadd [#allocation5], %s96
      %s99 = sshll.u32 [#allocation8], 4
      %s100 = int_to_ptr.vmem [resolvable:$true] %s99
      %102 = dma.vmem_to_hbm [thread:$0]  %s100, 128, %s2, [#allocation5]
    $region29: #{tpu_custom_call.1} parent=1 // pred_fallthru
      _
    // Predicated region
    $region30: #{tpu_custom_call.1} parent=1 // pred_check
      _
    $region31: #{tpu_custom_call.1} parent=1 // pred_check_branch
      %104 = sbr.rel (0) target = $region33
    $region32: #{tpu_custom_call.1} parent=1 // pred_region
      %105 = dma.done [#allocation5], 128
    $region33: #{tpu_custom_call.1} parent=1 // pred_fallthru
      _
    %106 = vsyncpa [#allocation4], 1
    %107 = vsyncpa [#allocation7], 1
    %108 = vsyncpa [#allocation5], 1

</llo_original>
